<compile_context>
chip_gen: v7x
topology: tpu7x:2x2x1
jax: 0.10.0
libtpu: 0.0.40
codegen_flags: <defaults>
</compile_context>

<pallas_src>
import functools

import jax
import jax.numpy as jnp
from jax.experimental import pallas as pl
from jax.experimental.pallas import tpu as pltpu

_LANE_CANDIDATES = (1024, 512, 256, 128)
# Per-grid-step HBM traffic target (input + output bytes of one block).
# ~10 MiB/step amortizes the ~0.35 us per-step overhead to <10% of a step's
# HBM time even on v7x (3.2 TB/s), while the ~20 MiB double-buffered working
# set fits comfortably under the 48 MiB scoped-VMEM limit below.
_TARGET_BLOCK_BYTES = 10 * 1024 * 1024
_VMEM_LIMIT_BYTES = 48 * 1024 * 1024   # < v7x 64 MiB physical; v5e/v6e have 128 MiB
# Keep at least this many grid steps when the data allows (pipelining overlap
# + megacore sharding on v7x).  Default 2-deep pipelining is kept (no Buffered).
_MIN_GRID_BLOCKS = 4
_SUBLANE_ALIGN = 32   # multiple of 32 rows keeps u8 (32,128) input tiles unmasked


def _convert_kernel(x_ref, o_ref, *, scale):
    # Elementwise: cast to f32, scale (skip the multiply for float/bool inputs),
    # then cast to the target dtype.  Note: the scale is applied in float32
    # (>= torch precision; may differ from torch by 1 ulp for fp16/bf16 targets).
    x = x_ref[...].astype(jnp.float32)
    if scale != 1.0:
        x = x * jnp.float32(scale)
    o_ref[...] = x.astype(o_ref.dtype)


def _cost(n, in_dtype, out_dtype):
    in_b = jnp.dtype(in_dtype).itemsize
    out_b = jnp.dtype(out_dtype).itemsize
    return pl.CostEstimate(flops=n, transcendentals=0,
                           bytes_accessed=n * (in_b + out_b))


def _compiler_params():
    return pltpu.CompilerParams(
        dimension_semantics=("parallel",),
        vmem_limit_bytes=_VMEM_LIMIT_BYTES,
    )


def _block_elems_budget(in_dtype, out_dtype):
    bytes_per_elem = jnp.dtype(in_dtype).itemsize + jnp.dtype(out_dtype).itemsize
    return max(1, _TARGET_BLOCK_BYTES // bytes_per_elem)


def _pallas_convert_2d(x2d, dtype, scale):
    """Elementwise convert on a lane-dense 2-D view (rows, lane); lane % 128 == 0."""
    rows, lane = x2d.shape
    n = rows * lane
    kernel = functools.partial(_convert_kernel, scale=scale)

    budget_rows = _block_elems_budget(x2d.dtype, dtype) // lane
    max_block_rows = max(_SUBLANE_ALIGN,
                         (budget_rows // _SUBLANE_ALIGN) * _SUBLANE_ALIGN)

    if rows <= _SUBLANE_ALIGN:
        # Too small to split with aligned blocks; single full-dim block (legal).
        block_rows = rows
    else:
        # Aim for >= _MIN_GRID_BLOCKS steps, capped by the VMEM byte budget,
        # rounded down to a multiple of 32 rows.
        desired = pl.cdiv(rows, _MIN_GRID_BLOCKS)
        desired = max(_SUBLANE_ALIGN, (desired // _SUBLANE_ALIGN) * _SUBLANE_ALIGN)
        block_rows = min(max_block_rows, desired)

    grid = (pl.cdiv(rows, block_rows),)
    return pl.pallas_call(
        kernel,
        out_shape=jax.ShapeDtypeStruct((rows, lane), dtype),
        grid_spec=pltpu.PrefetchScalarGridSpec(
            num_scalar_prefetch=0,
            grid=grid,
            in_specs=[pl.BlockSpec((block_rows, lane), lambda i: (i, 0))],
            out_specs=pl.BlockSpec((block_rows, lane), lambda i: (i, 0)),
        ),
        compiler_params=_compiler_params(),
        cost_estimate=_cost(n, x2d.dtype, dtype),
    )(x2d)


def _pallas_convert_row(x_row, dtype, scale):
    """Fallback for element counts not divisible by 128: tile the lane dim of a
    (1, n) view directly; Pallas masks the ragged last block (no pad, no slice)."""
    _, n = x_row.shape
    kernel = functools.partial(_convert_kernel, scale=scale)

    budget = _block_elems_budget(x_row.dtype, dtype)
    max_block = max(128, (budget // 128) * 128)

    if n <= _MIN_GRID_BLOCKS * 128:
        block = n   # single full-dim block (legal for any size); tiny input
    else:
        desired = max(128, (pl.cdiv(n, _MIN_GRID_BLOCKS) // 128) * 128)
        block = min(max_block, desired)

    grid = (pl.cdiv(n, block),)
    return pl.pallas_call(
        kernel,
        out_shape=jax.ShapeDtypeStruct((1, n), dtype),
        grid_spec=pltpu.PrefetchScalarGridSpec(
            num_scalar_prefetch=0,
            grid=grid,
            in_specs=[pl.BlockSpec((1, block), lambda i: (0, i))],
            out_specs=pl.BlockSpec((1, block), lambda i: (0, i)),
        ),
        compiler_params=_compiler_params(),
        cost_estimate=_cost(n, x_row.dtype, dtype),
    )(x_row)


def convert_image_dtype(image: jax.Array, dtype=jnp.float32) -> jax.Array:
    """JAX/Pallas equivalent of torchvision F.convert_image_dtype for a
    floating-point target dtype (default float32)."""
    assert jnp.issubdtype(dtype, jnp.floating), "only float target dtype implemented"
    # TODO(synk): float -> integer target branch (rescale + saturate) of
    #             convert_image_dtype is not implemented.

    if image.dtype == dtype:
        return image

    if image.dtype == jnp.bool_ or jnp.issubdtype(image.dtype, jnp.floating):
        scale = 1.0
    else:
        # Matches torchvision: divide by the max value of the input int dtype.
        scale = 1.0 / float(jnp.iinfo(image.dtype).max)

    orig_shape = image.shape
    n = image.size
    if n == 0:
        return image.astype(dtype)

    # Pick the widest lane dimension that divides the element count so the
    # flat reshape is pure layout plumbing (no padding, no data copy).
    lane = None
    for cand in _LANE_CANDIDATES:
        if n % cand == 0:
            lane = cand
            break

    if lane is not None:
        out2d = _pallas_convert_2d(image.reshape(n // lane, lane), dtype, scale)
        return out2d.reshape(orig_shape)

    # n not a multiple of 128: lane-tile a (1, n) view; ragged last block masked.
    out_row = _pallas_convert_row(image.reshape(1, n), dtype, scale)
    return out_row.reshape(orig_shape)


class ConvertImageDtype:
    """Mirror of the PyTorch module: (image, target) -> (converted_image, target)."""

    def __init__(self, dtype=jnp.float32):
        self.dtype = dtype

    def __call__(self, image, target=None):
        return convert_image_dtype(image, self.dtype), target


if __name__ == "__main__":
    key = jax.random.PRNGKey(0)
    mod = ConvertImageDtype(jnp.float32)

    # Typical image input: uint8 NCHW (single-block path).
    x_u8 = jax.random.randint(key, (2, 4, 16, 16), 0, 256, dtype=jnp.int32).astype(jnp.uint8)
    out, tgt = mod(x_u8, target=None)
    out = jax.block_until_ready(out)
    ref = x_u8.astype(jnp.float32) / 255.0
    assert out.shape == x_u8.shape and out.dtype == jnp.float32
    assert jnp.max(jnp.abs(out - ref)) < 1e-6

    # Float -> float (plain cast) branch.
    x_bf16 = jax.random.uniform(key, (2, 4, 16, 16), dtype=jnp.float32).astype(jnp.bfloat16)
    out2, _ = mod(x_bf16, target=None)
    out2 = jax.block_until_ready(out2)
    assert out2.dtype == jnp.float32
    assert jnp.max(jnp.abs(out2 - x_bf16.astype(jnp.float32))) < 1e-6

    # Realistic shape exercising the multi-block path (>=4 blocks, ragged last).
    x_big = jax.random.randint(key, (2, 3, 224, 224), 0, 256, dtype=jnp.int32).astype(jnp.uint8)
    out3, _ = mod(x_big, target=None)
    out3 = jax.block_until_ready(out3)
    ref3 = x_big.astype(jnp.float32) / 255.0
    assert out3.shape == x_big.shape and out3.dtype == jnp.float32
    assert jnp.max(jnp.abs(out3 - ref3)) < 1e-6

    # Odd element count (1155, not a multiple of 128): pad-free fallback path.
    x_odd = jax.random.randint(key, (3, 5, 7, 11), 0, 256, dtype=jnp.int32).astype(jnp.uint8)
    out4, _ = mod(x_odd, target=None)
    out4 = jax.block_until_ready(out4)
    ref4 = x_odd.astype(jnp.float32) / 255.0
    assert out4.shape == x_odd.shape and out4.dtype == jnp.float32
    assert jnp.max(jnp.abs(out4 - ref4)) < 1e-6

    print("KERNEL_OK")
</pallas_src>

<mosaic_0001>
module attributes {stable_mosaic.version = 11 : i64} {
  func.func @_convert_kernel(%arg0: i32, %arg1: memref<2x1024xi8, #tpu.memory_space<vmem>>, %arg2: memref<2x1024xf32, #tpu.memory_space<vmem>>) attributes {dimension_semantics = [#tpu.dimension_semantics<parallel>], iteration_bounds = array<i64: 1>, scalar_prefetch = 0 : i64, scratch_operands = 0 : i64, tpu.core_type = #tpu.core_type<tc>, window_params = [{transform_indices = @transform_0, window_bounds = array<i64: 2, 1024>}, {transform_indices = @transform_1, window_bounds = array<i64: 2, 1024>}]} {
    %c0 = arith.constant 0 : index
    %c0_0 = arith.constant 0 : index
    %0 = vector.load %arg1[%c0, %c0_0] : memref<2x1024xi8, #tpu.memory_space<vmem>>, vector<2x1024xi8>
    %1 = arith.uitofp %0 : vector<2x1024xi8> to vector<2x1024xf32>
    %cst = arith.constant 0.00392156886 : f32
    %2 = vector.broadcast %cst : f32 to vector<2x1024xf32>
    %3 = arith.mulf %1, %2 : vector<2x1024xf32>
    %c0_1 = arith.constant 0 : index
    %c0_2 = arith.constant 0 : index
    %4 = vector.load %arg2[%c0_1, %c0_2] : memref<2x1024xf32, #tpu.memory_space<vmem>>, vector<2x1024xf32>
    tpu.vector_store %arg2[%c0_1, %c0_2], %3 {strides = array<i32>} : memref<2x1024xf32, #tpu.memory_space<vmem>>, vector<2x1024xf32>,
    return
  }
  func.func @transform_0(%arg0: i32) -> (i32, i32) {
    %c0_i32 = arith.constant 0 : i32
    %c0_i32_0 = arith.constant 0 : i32
    return %arg0, %c0_i32 : i32, i32
  }
  func.func @transform_1(%arg0: i32) -> (i32, i32) {
    %c0_i32 = arith.constant 0 : i32
    %c0_i32_0 = arith.constant 0 : i32
    return %arg0, %c0_i32 : i32, i32
  }
}

</mosaic_0001>

<llo_original>
// kernel: tpu_custom_call.1
$region0: #{tpu_custom_call.1}
  #allocation0 [shape = 'u32[]', space=smem, size = 0x4, offset = 0x4, fixed_abs, tag = 'smem constant byte address 0x4 - core index']
  #allocation1 [shape = 'u32[144,128]{1,0:T(1,128)}', space=vmem, size = 0x12000, scoped, tag = 'internal scratch']
  %s0 = inlined_call_operand.hbm [shape: u8[2,1024], index: 0, kind: input, shape index: {}]
  %s1 = inlined_call_operand.hbm [shape: f32[2,1024], index: 1, kind: output, shape index: {}]
  %s2 = sld [smem:[#allocation0]]
  $region18: #{tpu_custom_call.1} parent=0
    _
  %s4 = ssub.s32 1, %s2
  %s5 = scalar_select 0, %s4, %s2
  $region1: #{tpu_custom_call.1} parent=0
    #allocation2 [shape = 'u8[4096]{0}', space=vmem, size = 0x1000, scoped, tag = 'input window, operand 0, single buffered']
    #allocation3 [shape = 's32[1]{0}', space=sflag, size = 0x4, scoped, tag = 'scoped memory for tpu_custom_call.1']
    #allocation4 [shape = 's32[1]{0}', space=sflag, size = 0x4, scoped, tag = 'scoped memory for tpu_custom_call.1']
    #allocation5 [shape = 'u8[8192]{0}', space=vmem, size = 0x2000, scoped, tag = 'output window, operand 0, single buffered']
    %6 = vsyncpa [#allocation3], 0
    %7 = vsyncpa [#allocation4], 0
    // Predicated region
    $region2: #{tpu_custom_call.1} parent=1 // pred_check
      _
    $region3: #{tpu_custom_call.1} parent=1 // pred_check_branch
      %9 = sbr.rel (0) target = $region5
    $region4: #{tpu_custom_call.1} parent=1 // pred_region
      %s11 = ssub.s32 128, 128
      %12 = vsyncadd [#allocation3], %s11
      %s14 = sshll.u32 [#allocation2], 4
      %s15 = int_to_ptr.vmem [resolvable:$true] %s14
      %17 = dma.hbm_to_vmem [thread:$0]  %s0, 128, %s15, [#allocation3]
    $region5: #{tpu_custom_call.1} parent=1 // pred_fallthru
      _
    // Predicated region
    $region6: #{tpu_custom_call.1} parent=1 // pred_check
      _
    $region7: #{tpu_custom_call.1} parent=1 // pred_check_branch
      %19 = sbr.rel (0) target = $region9
    $region8: #{tpu_custom_call.1} parent=1 // pred_region
      %20 = dma.done [#allocation3], 128
    $region9: #{tpu_custom_call.1} parent=1 // pred_fallthru
      _
    %v21 = vld [vmem:[#allocation2] sm:$0xff]
    %v22 = vunpack.c.0.s8 %v21
    %v23 = vunpack.c.1.s8 %v21
    %v24 = vunpack.c.2.s8 %v21
    %v25 = vunpack.c.3.s8 %v21
    %v26 = vand.u32 %v22, 255
    %v27 = vand.u32 %v23, 255
    %v28 = vand.u32 %v24, 255
    %v29 = vand.u32 %v25, 255
    %v30 = vcvt.s32.f32 %v26
    %v31 = vcvt.s32.f32 %v27
    %v32 = vcvt.s32.f32 %v28
    %v33 = vcvt.s32.f32 %v29
    %v34 = vmul.f32 %v30, 0.003921569
    %v35 = vmul.f32 %v31, 0.003921569
    %v36 = vmul.f32 %v32, 0.003921569
    %v37 = vmul.f32 %v33, 0.003921569
    %v43 = vunpack.c.l.s4 1983009808
    %v44 = vunpack.c.0.s8 %v43
    %v45 = vlaneseq
    %v46 = vshrl.u32 %v45, 7
    %v47 = vsub.s32 %v44, %v46
    %v48 = vrot.slane %v34, %v47
    %v50 = vunpack.c.l.s4 1983009808
    %v51 = vunpack.c.0.s8 %v50
    %v52 = vlaneseq
    %v53 = vshrl.u32 %v52, 7
    %v54 = vsub.s32 %v51, %v53
    %v55 = vrot.slane %v35, %v54
    %v56 = vcombine.low %v48, %v55
    %v58 = vunpack.c.l.s4 1983009808
    %v59 = vunpack.c.0.s8 %v58
    %v60 = vlaneseq
    %v61 = vshrl.u32 %v60, 7
    %v62 = vsub.s32 %v59, %v61
    %v63 = vrot.slane %v36, %v62
    %v65 = vunpack.c.l.s4 1983009808
    %v66 = vunpack.c.0.s8 %v65
    %v67 = vlaneseq
    %v68 = vshrl.u32 %v67, 7
    %v69 = vsub.s32 %v66, %v68
    %v70 = vrot.slane %v37, %v69
    %v71 = vcombine.low %v63, %v70
    %74 = vst [vmem:[#allocation5] sm:$0xff] %v56
    %75 = vst [vmem:[#allocation5 + $0x8] sm:$0xff] %v71
    // Predicated region
    $region10: #{tpu_custom_call.1} parent=1 // pred_check
      _
    $region11: #{tpu_custom_call.1} parent=1 // pred_check_branch
      %77 = sbr.rel (0) target = $region13
    $region12: #{tpu_custom_call.1} parent=1 // pred_region
      %s79 = ssub.s32 256, 256
      %80 = vsyncadd [#allocation4], %s79
      %s82 = sshll.u32 [#allocation5], 4
      %s83 = int_to_ptr.vmem [resolvable:$true] %s82
      %85 = dma.vmem_to_hbm [thread:$0]  %s83, 256, %s1, [#allocation4]
    $region13: #{tpu_custom_call.1} parent=1 // pred_fallthru
      _
    // Predicated region
    $region14: #{tpu_custom_call.1} parent=1 // pred_check
      _
    $region15: #{tpu_custom_call.1} parent=1 // pred_check_branch
      %87 = sbr.rel (0) target = $region17
    $region16: #{tpu_custom_call.1} parent=1 // pred_region
      %88 = dma.done [#allocation4], 256
    $region17: #{tpu_custom_call.1} parent=1 // pred_fallthru
      _
    %89 = vsyncpa [#allocation3], 1
    %90 = vsyncpa [#allocation4], 1

</llo_original>
